<compile_context>
chip_gen: v5e
topology: v5e:2x2
jax: 0.10.0
libtpu: 0.0.40
codegen_flags: <defaults>
</compile_context>

<pallas_src>
import functools

import jax
import jax.numpy as jnp
from jax import lax
from jax.experimental import pallas as pl
from jax.experimental.pallas import tpu as pltpu


def _swishglu_kernel(beta_ref, x_ref, w_ref, bw_ref, v_ref, bv_ref, o_ref,
                     gacc_ref, vacc_ref):
    # beta_ref : SMEM (1, 1) f32  — SwishParam.beta
    # x_ref    : VMEM (tm, tk)
    # w_ref    : VMEM (tn, tk)    — W tile, PyTorch [out, in] layout (no transpose)
    # bw_ref   : VMEM (1, tn)
    # v_ref    : VMEM (tn, tk)    — V tile, PyTorch [out, in] layout
    # bv_ref   : VMEM (1, tn)
    # o_ref    : VMEM (tm, tn)
    # gacc_ref, vacc_ref : VMEM (tm, tn) f32 accumulators, resident across the K axis.
    k = pl.program_id(2)

    @pl.when(k == 0)
    def _():
        gacc_ref[...] = jnp.zeros_like(gacc_ref)
        vacc_ref[...] = jnp.zeros_like(vacc_ref)

    x = x_ref[...]
    # Contract x's K (axis 1) against the weights' K (axis 1): x[tm,tk] . w[tn,tk] -> [tm,tn]
    dn = (((1,), (1,)), ((), ()))
    gacc_ref[...] += lax.dot_general(x, w_ref[...], dn,
                                     preferred_element_type=jnp.float32)
    vacc_ref[...] += lax.dot_general(x, v_ref[...], dn,
                                     preferred_element_type=jnp.float32)

    @pl.when(k == pl.num_programs(2) - 1)
    def _():
        beta = beta_ref[0, 0]
        g = gacc_ref[...] + bw_ref[...]          # gate pre-activation, f32
        val = vacc_ref[...] + bv_ref[...]        # value, f32
        gate = g * jax.nn.sigmoid(g * beta)      # parametric swish (f32 epilogue)
        o_ref[...] = (gate * val).astype(o_ref.dtype)


def _round_up(a, b):
    return ((a + b - 1) // b) * b


@functools.partial(jax.jit, static_argnames=("tm", "tn", "tk"))
def swishglu(x, w, bw, v, bv, beta, *, tm=256, tn=512, tk=512):
    """x: [..., K]; w, v: [N, K] (PyTorch Linear layout); bw, bv: [N]; beta: scalar."""
    orig_shape = x.shape
    K = orig_shape[-1]
    N = w.shape[0]
    x2 = x.reshape(-1, K)
    M = x2.shape[0]

    # dtype-aware sublane granularity (8 for f32, 16 for bf16)
    sub = 16 if x.dtype == jnp.bfloat16 else 8

    # Clamp tiles to the (aligned) problem size; keep lane dims multiples of 128.
    tm_e = min(tm, _round_up(M, sub))
    tn_e = min(tn, _round_up(N, 128))
    tk_e = min(tk, _round_up(K, 128))

    Mp = _round_up(M, tm_e)
    Np = _round_up(N, tn_e)
    Kp = _round_up(K, tk_e)

    # Zero-pad to tile multiples (padded rows/cols are sliced off; padded K contributes 0).
    x2p = jnp.pad(x2, ((0, Mp - M), (0, Kp - K)))
    wp = jnp.pad(w, ((0, Np - N), (0, Kp - K)))
    vp = jnp.pad(v, ((0, Np - N), (0, Kp - K)))
    bwp = jnp.pad(bw, (0, Np - N)).reshape(1, Np)
    bvp = jnp.pad(bv, (0, Np - N)).reshape(1, Np)
    beta2 = jnp.asarray(beta, jnp.float32).reshape(1, 1)

    grid = (Mp // tm_e, Np // tn_e, Kp // tk_e)

    # Explicit VMEM budget: double-buffered streamed tiles + 2 f32 accumulators.
    bpe = jnp.dtype(x.dtype).itemsize
    streamed = 2 * (tm_e * tk_e + 2 * tn_e * tk_e + 2 * tn_e + tm_e * tn_e) * bpe
    accum = 2 * tm_e * tn_e * 4
    vmem_limit = min(max(int((streamed + accum) * 1.5) + (4 << 20), 16 << 20), 64 << 20)

    out = pl.pallas_call(
        _swishglu_kernel,
        out_shape=jax.ShapeDtypeStruct((Mp, Np), x.dtype),
        grid_spec=pltpu.PrefetchScalarGridSpec(
            num_scalar_prefetch=0,
            grid=grid,
            in_specs=[
                pl.BlockSpec(memory_space=pltpu.SMEM),                    # beta (1,1)
                pl.BlockSpec((tm_e, tk_e), lambda i, j, k: (i, k)),       # x tile
                pl.BlockSpec((tn_e, tk_e), lambda i, j, k: (j, k)),       # W tile [N,K]
                pl.BlockSpec((1, tn_e), lambda i, j, k: (0, j)),          # bW tile
                pl.BlockSpec((tn_e, tk_e), lambda i, j, k: (j, k)),       # V tile [N,K]
                pl.BlockSpec((1, tn_e), lambda i, j, k: (0, j)),          # bV tile
            ],
            out_specs=pl.BlockSpec((tm_e, tn_e), lambda i, j, k: (i, j)),
            scratch_shapes=[
                pltpu.VMEM((tm_e, tn_e), jnp.float32),   # gate accumulator
                pltpu.VMEM((tm_e, tn_e), jnp.float32),   # value accumulator
            ],
        ),
        compiler_params=pltpu.CompilerParams(
            dimension_semantics=("parallel", "parallel", "arbitrary"),
            vmem_limit_bytes=vmem_limit,
        ),
    )(beta2, x2p, wp, bwp, vp, bvp)

    return out[:M, :N].reshape(*orig_shape[:-1], N)


def _reference(x, w, bw, v, bv, beta):
    g = x @ w.T + bw
    val = x @ v.T + bv
    return (g * jax.nn.sigmoid(g * beta)) * val


if __name__ == "__main__":
    key = jax.random.PRNGKey(0)
    batch, seq, input_dim, output_dim = 2, 8, 32, 32

    k1, k2, k3, k4, k5 = jax.random.split(key, 5)
    x = jax.random.normal(k1, (batch, seq, input_dim), dtype=jnp.float32)
    # nn.Linear(input_dim, output_dim): weight [out, in], bias [out]
    w = jax.random.normal(k2, (output_dim, input_dim), dtype=jnp.float32) * 0.1
    bw = jax.random.normal(k3, (output_dim,), dtype=jnp.float32) * 0.1
    v = jax.random.normal(k4, (output_dim, input_dim), dtype=jnp.float32) * 0.1
    bv = jax.random.normal(k5, (output_dim,), dtype=jnp.float32) * 0.1
    beta = jnp.float32(1.0)  # SwishParam.beta init value

    out = swishglu(x, w, bw, v, bv, beta)
    jax.block_until_ready(out)

    ref = _reference(x, w, bw, v, bv, beta)
    assert out.shape == (batch, seq, output_dim)
    assert jnp.allclose(out, ref, atol=1e-5, rtol=1e-5), "mismatch vs reference"

    # TODO(synk): optional bf16 weight/activation path for v6e/v7x MXU throughput
    # (f32 kept here to match the PyTorch module's numerics exactly).

    print("KERNEL_OK")
</pallas_src>

<mosaic_0001>
module attributes {stable_mosaic.version = 11 : i64} {
  func.func @_swishglu_kernel(%arg0: i32, %arg1: i32, %arg2: i32, %arg3: memref<1x1xf32, #tpu.memory_space<smem>>, %arg4: memref<16x128xf32, #tpu.memory_space<vmem>>, %arg5: memref<128x128xf32, #tpu.memory_space<vmem>>, %arg6: memref<1x128xf32, #tpu.memory_space<vmem>>, %arg7: memref<128x128xf32, #tpu.memory_space<vmem>>, %arg8: memref<1x128xf32, #tpu.memory_space<vmem>>, %arg9: memref<16x128xf32, #tpu.memory_space<vmem>>, %arg10: memref<16x128xf32, #tpu.memory_space<vmem>>, %arg11: memref<16x128xf32, #tpu.memory_space<vmem>>) attributes {dimension_semantics = [#tpu.dimension_semantics<parallel>, #tpu.dimension_semantics<parallel>, #tpu.dimension_semantics<arbitrary>], iteration_bounds = array<i64: 1, 1, 1>, scalar_prefetch = 0 : i64, scratch_operands = 2 : i64, tpu.core_type = #tpu.core_type<tc>, window_params = [{transform_indices = @transform_0, window_bounds = array<i64: 1, 1>}, {transform_indices = @transform_1, window_bounds = array<i64: 16, 128>}, {transform_indices = @transform_2, window_bounds = array<i64: 128, 128>}, {transform_indices = @transform_3, window_bounds = array<i64: 1, 128>}, {transform_indices = @transform_4, window_bounds = array<i64: 128, 128>}, {transform_indices = @transform_5, window_bounds = array<i64: 1, 128>}, {transform_indices = @transform_6, window_bounds = array<i64: 16, 128>}]} {
    %c0_i32 = arith.constant 0 : i32
    %0 = arith.cmpi eq, %arg2, %c0_i32 : i32
    %1 = arith.extui %0 : i1 to i32
    %c0_i32_0 = arith.constant 0 : i32
    %2 = arith.cmpi ne, %1, %c0_i32_0 : i32
    scf.if %2 {
      %cst_17 = arith.constant 0.000000e+00 : f32
      %17 = vector.broadcast %cst_17 : f32 to vector<16x128xf32>
      %c0_18 = arith.constant 0 : index
      %c0_19 = arith.constant 0 : index
      %18 = vector.load %arg10[%c0_18, %c0_19] : memref<16x128xf32, #tpu.memory_space<vmem>>, vector<16x128xf32>
      tpu.vector_store %arg10[%c0_18, %c0_19], %17 {strides = array<i32>} : memref<16x128xf32, #tpu.memory_space<vmem>>, vector<16x128xf32>,
      %cst_20 = arith.constant 0.000000e+00 : f32
      %19 = vector.broadcast %cst_20 : f32 to vector<16x128xf32>
      %c0_21 = arith.constant 0 : index
      %c0_22 = arith.constant 0 : index
      %20 = vector.load %arg11[%c0_21, %c0_22] : memref<16x128xf32, #tpu.memory_space<vmem>>, vector<16x128xf32>
      tpu.vector_store %arg11[%c0_21, %c0_22], %19 {strides = array<i32>} : memref<16x128xf32, #tpu.memory_space<vmem>>, vector<16x128xf32>,
    } else {
    }
    %c0 = arith.constant 0 : index
    %c0_1 = arith.constant 0 : index
    %3 = vector.load %arg4[%c0, %c0_1] : memref<16x128xf32, #tpu.memory_space<vmem>>, vector<16x128xf32>
    %c0_2 = arith.constant 0 : index
    %c0_3 = arith.constant 0 : index
    %4 = vector.load %arg10[%c0_2, %c0_3] : memref<16x128xf32, #tpu.memory_space<vmem>>, vector<16x128xf32>
    %c0_4 = arith.constant 0 : index
    %c0_5 = arith.constant 0 : index
    %5 = vector.load %arg5[%c0_4, %c0_5] : memref<128x128xf32, #tpu.memory_space<vmem>>, vector<128x128xf32>
    %cst = arith.constant dense<0.000000e+00> : vector<16x128xf32>
    %6 = tpu.matmul %3, %5, %cst {dimension_numbers = #tpu.dot_dimension_numbers<[1], [1], [0], [0], [0, 0, 1, 0], [], []>} : vector<16x128xf32>, vector<128x128xf32>, vector<16x128xf32> -> vector<16x128xf32>
    %7 = arith.addf %4, %6 : vector<16x128xf32>
    %c0_6 = arith.constant 0 : index
    %c0_7 = arith.constant 0 : index
    %8 = vector.load %arg10[%c0_6, %c0_7] : memref<16x128xf32, #tpu.memory_space<vmem>>, vector<16x128xf32>
    tpu.vector_store %arg10[%c0_6, %c0_7], %7 {strides = array<i32>} : memref<16x128xf32, #tpu.memory_space<vmem>>, vector<16x128xf32>,
    %c0_8 = arith.constant 0 : index
    %c0_9 = arith.constant 0 : index
    %9 = vector.load %arg11[%c0_8, %c0_9] : memref<16x128xf32, #tpu.memory_space<vmem>>, vector<16x128xf32>
    %c0_10 = arith.constant 0 : index
    %c0_11 = arith.constant 0 : index
    %10 = vector.load %arg7[%c0_10, %c0_11] : memref<128x128xf32, #tpu.memory_space<vmem>>, vector<128x128xf32>
    %cst_12 = arith.constant dense<0.000000e+00> : vector<16x128xf32>
    %11 = tpu.matmul %3, %10, %cst_12 {dimension_numbers = #tpu.dot_dimension_numbers<[1], [1], [0], [0], [0, 0, 1, 0], [], []>} : vector<16x128xf32>, vector<128x128xf32>, vector<16x128xf32> -> vector<16x128xf32>
    %12 = arith.addf %9, %11 : vector<16x128xf32>
    %c0_13 = arith.constant 0 : index
    %c0_14 = arith.constant 0 : index
    %13 = vector.load %arg11[%c0_13, %c0_14] : memref<16x128xf32, #tpu.memory_space<vmem>>, vector<16x128xf32>
    tpu.vector_store %arg11[%c0_13, %c0_14], %12 {strides = array<i32>} : memref<16x128xf32, #tpu.memory_space<vmem>>, vector<16x128xf32>,
    %c0_i32_15 = arith.constant 0 : i32
    %14 = arith.cmpi eq, %arg2, %c0_i32_15 : i32
    %15 = arith.extui %14 : i1 to i32
    %c0_i32_16 = arith.constant 0 : i32
    %16 = arith.cmpi ne, %15, %c0_i32_16 : i32
    scf.if %16 {
      %c0_17 = arith.constant 0 : index
      %c0_18 = arith.constant 0 : index
      %17 = memref.load %arg3[%c0_17, %c0_18] : memref<1x1xf32, #tpu.memory_space<smem>>
      %c0_19 = arith.constant 0 : index
      %c0_20 = arith.constant 0 : index
      %18 = vector.load %arg10[%c0_19, %c0_20] : memref<16x128xf32, #tpu.memory_space<vmem>>, vector<16x128xf32>
      %c0_21 = arith.constant 0 : index
      %c0_22 = arith.constant 0 : index
      %19 = vector.load %arg6[%c0_21, %c0_22] : memref<1x128xf32, #tpu.memory_space<vmem>>, vector<1x128xf32>
      %20 = vector.broadcast %19 : vector<1x128xf32> to vector<16x128xf32>
      %21 = arith.addf %18, %20 : vector<16x128xf32>
      %c0_23 = arith.constant 0 : index
      %c0_24 = arith.constant 0 : index
      %22 = vector.load %arg11[%c0_23, %c0_24] : memref<16x128xf32, #tpu.memory_space<vmem>>, vector<16x128xf32>
      %c0_25 = arith.constant 0 : index
      %c0_26 = arith.constant 0 : index
      %23 = vector.load %arg8[%c0_25, %c0_26] : memref<1x128xf32, #tpu.memory_space<vmem>>, vector<1x128xf32>
      %24 = vector.broadcast %23 : vector<1x128xf32> to vector<16x128xf32>
      %25 = arith.addf %22, %24 : vector<16x128xf32>
      %26 = vector.broadcast %17 : f32 to vector<16x128xf32>
      %27 = arith.mulf %21, %26 : vector<16x128xf32>
      %28 = arith.negf %27 : vector<16x128xf32>
      %29 = math.exp %28 : vector<16x128xf32>
      %cst_27 = arith.constant 1.000000e+00 : f32
      %30 = vector.broadcast %cst_27 : f32 to vector<16x128xf32>
      %31 = arith.addf %30, %29 : vector<16x128xf32>
      %32 = arith.divf %30, %31 : vector<16x128xf32>
      %33 = arith.mulf %21, %32 : vector<16x128xf32>
      %34 = arith.mulf %33, %25 : vector<16x128xf32>
      %c0_28 = arith.constant 0 : index
      %c0_29 = arith.constant 0 : index
      %35 = vector.load %arg9[%c0_28, %c0_29] : memref<16x128xf32, #tpu.memory_space<vmem>>, vector<16x128xf32>
      tpu.vector_store %arg9[%c0_28, %c0_29], %34 {strides = array<i32>} : memref<16x128xf32, #tpu.memory_space<vmem>>, vector<16x128xf32>,
    } else {
    }
    return
  }
  func.func @transform_0(%arg0: i32, %arg1: i32, %arg2: i32) -> (i32, i32) {
    %c0_i32 = arith.constant 0 : i32
    %c0_i32_0 = arith.constant 0 : i32
    %c0_i32_1 = arith.constant 0 : i32
    return %c0_i32, %c0_i32_0 : i32, i32
  }
  func.func @transform_1(%arg0: i32, %arg1: i32, %arg2: i32) -> (i32, i32) {
    %c0_i32 = arith.constant 0 : i32
    return %arg0, %arg2 : i32, i32
  }
  func.func @transform_2(%arg0: i32, %arg1: i32, %arg2: i32) -> (i32, i32) {
    %c0_i32 = arith.constant 0 : i32
    return %arg1, %arg2 : i32, i32
  }
  func.func @transform_3(%arg0: i32, %arg1: i32, %arg2: i32) -> (i32, i32) {
    %c0_i32 = arith.constant 0 : i32
    %c0_i32_0 = arith.constant 0 : i32
    return %c0_i32, %arg1 : i32, i32
  }
  func.func @transform_4(%arg0: i32, %arg1: i32, %arg2: i32) -> (i32, i32) {
    %c0_i32 = arith.constant 0 : i32
    return %arg1, %arg2 : i32, i32
  }
  func.func @transform_5(%arg0: i32, %arg1: i32, %arg2: i32) -> (i32, i32) {
    %c0_i32 = arith.constant 0 : i32
    %c0_i32_0 = arith.constant 0 : i32
    return %c0_i32, %arg1 : i32, i32
  }
  func.func @transform_6(%arg0: i32, %arg1: i32, %arg2: i32) -> (i32, i32) {
    %c0_i32 = arith.constant 0 : i32
    return %arg0, %arg1 : i32, i32
  }
}

</mosaic_0001>

<llo_original>
// kernel: swishglu.1
$region0: #{swishglu.1}
  #allocation0 [shape = 'u32[]', space=smem, size = 0x4, offset = 0x4, fixed_abs, tag = 'smem constant byte address 0x4 - core index']
  #allocation1 [shape = 'u32[72,128]{1,0:T(1,128)}', space=vmem, size = 0x9000, scoped, tag = 'internal scratch']
  #allocation2 [shape = 'f32[16,128]{1,0:T(8,128)}', space=vmem, size = 0x2000, scoped, tag = 'scratch operand']
  #allocation3 [shape = 'f32[16,128]{1,0:T(8,128)}', space=vmem, size = 0x2000, scoped, tag = 'scratch operand']
  #allocation4 [shape = 'f32[1,1]{1,0:T(1,128)S(6)}', space=smem, size = 0x200, scoped, tag = 'scoped memory for swishglu.1']
  %s0 = inlined_call_operand.<no memory space> [shape: f32[1,1], index: 0, kind: input, shape index: {}]
  %s1 = inlined_call_operand.vmem [shape: f32[16,128], index: 1, kind: input, shape index: {}]
  %s2 = inlined_call_operand.vmem [shape: f32[128,128], index: 2, kind: input, shape index: {}]
  %s3 = inlined_call_operand.vmem [shape: f32[1,128], index: 3, kind: input, shape index: {}]
  %s4 = inlined_call_operand.vmem [shape: f32[128,128], index: 4, kind: input, shape index: {}]
  %s5 = inlined_call_operand.vmem [shape: f32[1,128], index: 5, kind: input, shape index: {}]
  %s6 = inlined_call_operand.vmem [shape: f32[16,128], index: 6, kind: output, shape index: {}]
  %s7 = sld [smem:[#allocation0]]
  $region42: #{swishglu.1} parent=0
    _
  %s9 = ssub.s32 1, %s7
  %s10 = scalar_select 0, %s9, %s7
  %11 = sst [smem:[#allocation4]] %s0
  // Predicated region
  $region2: #{swishglu.1} parent=0 // pred_check
    _
  $region3: #{swishglu.1} parent=0 // pred_check_branch
    %13 = sbr.rel (0) target = $region5
  $region4: #{swishglu.1} parent=0 // pred_region
    _
  $region5: #{swishglu.1} parent=0 // pred_fallthru
    _
  // Predicated region
  $region6: #{swishglu.1} parent=0 // pred_check
    _
  $region7: #{swishglu.1} parent=0 // pred_check_branch
    %15 = sbr.rel (0) target = $region9
  $region8: #{swishglu.1} parent=0 // pred_region
    _
  $region9: #{swishglu.1} parent=0 // pred_fallthru
    _
  // Predicated region
  $region10: #{swishglu.1} parent=0 // pred_check
    _
  $region11: #{swishglu.1} parent=0 // pred_check_branch
    %17 = sbr.rel (0) target = $region13
  $region12: #{swishglu.1} parent=0 // pred_region
    _
  $region13: #{swishglu.1} parent=0 // pred_fallthru
    _
  // Predicated region
  $region14: #{swishglu.1} parent=0 // pred_check
    _
  $region15: #{swishglu.1} parent=0 // pred_check_branch
    %19 = sbr.rel (0) target = $region17
  $region16: #{swishglu.1} parent=0 // pred_region
    _
  $region17: #{swishglu.1} parent=0 // pred_fallthru
    _
  // Predicated region
  $region18: #{swishglu.1} parent=0 // pred_check
    _
  $region19: #{swishglu.1} parent=0 // pred_check_branch
    %21 = sbr.rel (0) target = $region21
  $region20: #{swishglu.1} parent=0 // pred_region
    _
  $region21: #{swishglu.1} parent=0 // pred_fallthru
    _
  // Predicated region
  $region22: #{swishglu.1} parent=0 // pred_check
    _
  $region23: #{swishglu.1} parent=0 // pred_check_branch
    %23 = sbr.rel (0) target = $region25
  $region24: #{swishglu.1} parent=0 // pred_region
    _
  $region25: #{swishglu.1} parent=0 // pred_fallthru
    _
  %p24 = scmp.eq.s32.totalorder 0, 0
  // Predicated region
  $region26: #{swishglu.1} parent=0 // pred_check
    %p25 = pneg %p24
  $region27: #{swishglu.1} parent=0 // pred_check_branch
    %27 = sbr.rel (%p25) target = $region29
  $region28: #{swishglu.1} parent=0 // pred_region
    %28 = vst [vmem:[#allocation2] sm:$0xff] 0.0
    %29 = vst [vmem:[#allocation2 + $0x8] sm:$0xff] 0.0
    %30 = vst [vmem:[#allocation3] sm:$0xff] 0.0
    %31 = vst [vmem:[#allocation3 + $0x8] sm:$0xff] 0.0
  $region29: #{swishglu.1} parent=0 // pred_fallthru
    _
  %v32 = vld [vmem:[%s1] sm:$0xff]
  %v33 = vld [vmem:[%s1 + $0x8] sm:$0xff]
  %v34 = vld [vmem:[#allocation2] sm:$0xff]
  %v35 = vld [vmem:[#allocation2 + $0x8] sm:$0xff]
  %v36 = vld [vmem:[%s2] sm:$0xff]
  %v37 = vld [vmem:[%s2 + $0x8] sm:$0xff]
  %v38 = vld [vmem:[%s2 + $0x10] sm:$0xff]
  %v39 = vld [vmem:[%s2 + $0x18] sm:$0xff]
  %v40 = vld [vmem:[%s2 + $0x20] sm:$0xff]
  %v41 = vld [vmem:[%s2 + $0x28] sm:$0xff]
  %v42 = vld [vmem:[%s2 + $0x30] sm:$0xff]
  %v43 = vld [vmem:[%s2 + $0x38] sm:$0xff]
  %v44 = vld [vmem:[%s2 + $0x40] sm:$0xff]
  %v45 = vld [vmem:[%s2 + $0x48] sm:$0xff]
  %v46 = vld [vmem:[%s2 + $0x50] sm:$0xff]
  %v47 = vld [vmem:[%s2 + $0x58] sm:$0xff]
  %v48 = vld [vmem:[%s2 + $0x60] sm:$0xff]
  %v49 = vld [vmem:[%s2 + $0x68] sm:$0xff]
  %v50 = vld [vmem:[%s2 + $0x70] sm:$0xff]
  %v51 = vld [vmem:[%s2 + $0x78] sm:$0xff]
  %52 = vmatpush.xpose.msra.mxu0 %v51
  %53 = vmatpush.xpose.msra.mxu0 %v50
  %54 = vmatpush.xpose.msra.mxu0 %v49
  %55 = vmatpush.xpose.msra.mxu0 %v48
  %56 = vmatpush.xpose.msra.mxu0 %v47
  %57 = vmatpush.xpose.msra.mxu0 %v46
  %58 = vmatpush.xpose.msra.mxu0 %v45
  %59 = vmatpush.xpose.msra.mxu0 %v44
  %60 = vmatpush.xpose.msra.mxu0 %v43
  %61 = vmatpush.xpose.msra.mxu0 %v42
  %62 = vmatpush.xpose.msra.mxu0 %v41
  %63 = vmatpush.xpose.msra.mxu0 %v40
  %64 = vmatpush.xpose.msra.mxu0 %v39
  %65 = vmatpush.xpose.msra.mxu0 %v38
  %66 = vmatpush.xpose.msra.mxu0 %v37
  %67 = vmatpush.xpose.msra.mxu0 %v36
  %68 = vmatmul.f32.gmra.mxu0 %v32
  %v69 = vpop.f32.mrf.mxu0
  %v70 = vadd.f32 0.0, %v69
  %71 = vmatmul.f32.gmra.mxu0 %v33
  %v72 = vpop.f32.mrf.mxu0
  %v73 = vadd.f32 0.0, %v72
  %74 = vdwg.mxu0
  %v75 = vadd.f32 %v34, %v70
  %v76 = vadd.f32 %v35, %v73
  %77 = vst [vmem:[#allocation2] sm:$0xff] %v75
  %78 = vst [vmem:[#allocation2 + $0x8] sm:$0xff] %v76
  %v79 = vld [vmem:[#allocation3] sm:$0xff]
  %v80 = vld [vmem:[#allocation3 + $0x8] sm:$0xff]
  %v81 = vld [vmem:[%s4] sm:$0xff]
  %v82 = vld [vmem:[%s4 + $0x8] sm:$0xff]
  %v83 = vld [vmem:[%s4 + $0x10] sm:$0xff]
  %v84 = vld [vmem:[%s4 + $0x18] sm:$0xff]
  %v85 = vld [vmem:[%s4 + $0x20] sm:$0xff]
  %v86 = vld [vmem:[%s4 + $0x28] sm:$0xff]
  %v87 = vld [vmem:[%s4 + $0x30] sm:$0xff]
  %v88 = vld [vmem:[%s4 + $0x38] sm:$0xff]
  %v89 = vld [vmem:[%s4 + $0x40] sm:$0xff]
  %v90 = vld [vmem:[%s4 + $0x48] sm:$0xff]
  %v91 = vld [vmem:[%s4 + $0x50] sm:$0xff]
  %v92 = vld [vmem:[%s4 + $0x58] sm:$0xff]
  %v93 = vld [vmem:[%s4 + $0x60] sm:$0xff]
  %v94 = vld [vmem:[%s4 + $0x68] sm:$0xff]
  %v95 = vld [vmem:[%s4 + $0x70] sm:$0xff]
  %v96 = vld [vmem:[%s4 + $0x78] sm:$0xff]
  %97 = vmatpush.xpose.msra.mxu0 %v96
  %98 = vmatpush.xpose.msra.mxu0 %v95
  %99 = vmatpush.xpose.msra.mxu0 %v94
  %100 = vmatpush.xpose.msra.mxu0 %v93
  %101 = vmatpush.xpose.msra.mxu0 %v92
  %102 = vmatpush.xpose.msra.mxu0 %v91
  %103 = vmatpush.xpose.msra.mxu0 %v90
  %104 = vmatpush.xpose.msra.mxu0 %v89
  %105 = vmatpush.xpose.msra.mxu0 %v88
  %106 = vmatpush.xpose.msra.mxu0 %v87
  %107 = vmatpush.xpose.msra.mxu0 %v86
  %108 = vmatpush.xpose.msra.mxu0 %v85
  %109 = vmatpush.xpose.msra.mxu0 %v84
  %110 = vmatpush.xpose.msra.mxu0 %v83
  %111 = vmatpush.xpose.msra.mxu0 %v82
  %112 = vmatpush.xpose.msra.mxu0 %v81
  %113 = vmatmul.f32.gmra.mxu0 %v32
  %v114 = vpop.f32.mrf.mxu0
  %v115 = vadd.f32 0.0, %v114
  %116 = vmatmul.f32.gmra.mxu0 %v33
  %v117 = vpop.f32.mrf.mxu0
  %v118 = vadd.f32 0.0, %v117
  %119 = vdwg.mxu0
  %v120 = vadd.f32 %v79, %v115
  %v121 = vadd.f32 %v80, %v118
  %122 = vst [vmem:[#allocation3] sm:$0xff] %v120
  %123 = vst [vmem:[#allocation3 + $0x8] sm:$0xff] %v121
  // Predicated region
  $region30: #{swishglu.1} parent=0 // pred_check
    %p124 = pneg %p24
  $region31: #{swishglu.1} parent=0 // pred_check_branch
    %126 = sbr.rel (%p124) target = $region33
  $region32: #{swishglu.1} parent=0 // pred_region
    %s127 = sld [smem:[#allocation4]]
    %v128 = vld [vmem:[#allocation2] sm:$0xff]
    %v129 = vld [vmem:[#allocation2 + $0x8] sm:$0xff]
    %v130 = vld [vmem:[%s3] sm:$0x1]
    %v132 = vperm.slane %v130, 0
    %v134 = vadd.f32 %v128, %v132
    %v135 = vadd.f32 %v129, %v132
    %v136 = vld [vmem:[#allocation3] sm:$0xff]
    %v137 = vld [vmem:[#allocation3 + $0x8] sm:$0xff]
    %v138 = vld [vmem:[%s5] sm:$0x1]
    %v140 = vperm.slane %v138, 0
    %v142 = vadd.f32 %v136, %v140
    %v143 = vadd.f32 %v137, %v140
    %v144 = vstv %s127
    %v145 = vmul.f32 %v134, %v144
    %v146 = vmul.f32 %v135, %v144
    %v147 = vxor.u32 %v145, 2147483648
    %v148 = vxor.u32 %v146, 2147483648
    %v149 = vmul.f32 %v147, 1.442695
    %v150 = vpow.pop %v149
    %v151 = vmul.f32 %v148, 1.442695
    %v152 = vpow.pop %v151
    %v153 = vadd.f32 %v150, 1.0
    %v154 = vadd.f32 %v152, 1.0
    %v155 = vrcp.pop %v153
    %v156 = vmul.f32 %v153, %v155
    %v157 = vsub.f32 1.0, %v156
    %v158 = vmul.f32 %v155, %v157
    %v159 = vadd.f32 %v155, %v158
    %vm160 = vweird.f32 %v153
    %vm161 = vweird.f32 %v155
    %vm162 = vmor %vm160, %vm161
    %v163 = vsel %vm162, %v155, %v159
    %v164 = vand.u32 2147483647, %v153
    %vm165 = vcmp.eq.f32.partialorder %v164, 8.507059e+37
    %v166 = vand.u32 %v153, 2147483648
    %v167 = vor.u32 1.1754944e-38, %v166
    %v168 = vsel %vm165, %v167, %v163
    %v169 = vmul.f32 1.0, %v168
    %v170 = vrcp.pop %v154
    %v171 = vmul.f32 %v154, %v170
    %v172 = vsub.f32 1.0, %v171
    %v173 = vmul.f32 %v170, %v172
    %v174 = vadd.f32 %v170, %v173
    %vm175 = vweird.f32 %v154
    %vm176 = vweird.f32 %v170
    %vm177 = vmor %vm175, %vm176
    %v178 = vsel %vm177, %v170, %v174
    %v179 = vand.u32 2147483647, %v154
    %vm180 = vcmp.eq.f32.partialorder %v179, 8.507059e+37
    %v181 = vand.u32 %v154, 2147483648
    %v182 = vor.u32 1.1754944e-38, %v181
    %v183 = vsel %vm180, %v182, %v178
    %v184 = vmul.f32 1.0, %v183
    %v185 = vmul.f32 %v134, %v169
    %v186 = vmul.f32 %v135, %v184
    %v187 = vmul.f32 %v185, %v142
    %v188 = vmul.f32 %v186, %v143
    %189 = vst [vmem:[%s6] sm:$0xff] %v187
    %190 = vst [vmem:[%s6 + $0x8] sm:$0xff] %v188
  $region33: #{swishglu.1} parent=0 // pred_fallthru
    _
  // Predicated region
  $region34: #{swishglu.1} parent=0 // pred_check
    _
  $region35: #{swishglu.1} parent=0 // pred_check_branch
    %192 = sbr.rel (0) target = $region37
  $region36: #{swishglu.1} parent=0 // pred_region
    _
  $region37: #{swishglu.1} parent=0 // pred_fallthru
    _
  // Predicated region
  $region38: #{swishglu.1} parent=0 // pred_check
    _
  $region39: #{swishglu.1} parent=0 // pred_check_branch
    %194 = sbr.rel (0) target = $region41
  $region40: #{swishglu.1} parent=0 // pred_region
    _
  $region41: #{swishglu.1} parent=0 // pred_fallthru
    _

</llo_original>
